<compile_context>
chip_gen: v6e
topology: v6e:2x2x1
jax: 0.10.0
libtpu: 0.0.40
codegen_flags: <defaults>
</compile_context>

<pallas_src>
import functools

import jax
import jax.numpy as jnp
from jax.experimental import pallas as pl
from jax.experimental.pallas import tpu as pltpu


def _layernorm2d_kernel(x_ref, p_ref, o_ref, *, eps):
    # x_ref / o_ref: (TB, C, THW) — channels on sublanes, spatial on lanes.
    # p_ref: (C, 2) fused [weight | bias] in f32, resident in VMEM.
    x = x_ref[...].astype(jnp.float32)
    mean = jnp.mean(x, axis=1, keepdims=True)           # (TB,1,THW) cross-sublane (XLU) reduce
    xc = x - mean                                       # x is dead after this point
    var = jnp.mean(xc * xc, axis=1, keepdims=True)      # biased variance, matches nn.LayerNorm
    p = p_ref[...]
    w = p[:, 0:1]                                       # (C,1) -> broadcasts over (TB,.,THW)
    b = p[:, 1:2]
    a = jax.lax.rsqrt(var + eps) * w                    # folded scale
    o_ref[...] = (xc * a + b).astype(o_ref.dtype)       # single output sweep; cast in the store


def _round_up(n, m):
    return ((n + m - 1) // m) * m


def _sublane_pad(c, itemsize):
    # Sublane tile height: 8 for 4-byte dtypes, 16 for 2-byte, 32 for 1-byte.
    sub = 8 * max(1, 4 // max(itemsize, 1))
    return _round_up(c, sub)


def _default_vmem_budgets():
    """(per-step tile budget, vmem_limit_bytes) sized per TPU generation."""
    vmem_cap = None
    try:
        info = pltpu.get_tpu_info()
        vmem_cap = getattr(info, "vmem_capacity_bytes", None)
    except Exception:
        vmem_cap = None
    if vmem_cap is None:
        vmem_cap = 64 * 1024 * 1024                     # conservative: assume v7x-class
    if vmem_cap <= 64 * 1024 * 1024:                    # v7x: 64 MiB physical per TC
        return 8 * 1024 * 1024, 48 * 1024 * 1024
    return 16 * 1024 * 1024, 64 * 1024 * 1024           # v5e / v6e: 128 MiB physical


def layernorm2d(x_nchw, weight, bias, *, eps=1e-6,
                vmem_tile_budget_bytes=None, vmem_limit_bytes=None):
    """Equivalent of the PyTorch LayerNorm2d.forward on NCHW input (no transposes)."""
    B, C, H, W = x_nchw.shape
    hw = H * W
    in_itemsize = jnp.dtype(x_nchw.dtype).itemsize
    out_itemsize = in_itemsize

    tile_budget_default, vmem_limit_default = _default_vmem_budgets()
    if vmem_tile_budget_bytes is None:
        vmem_tile_budget_bytes = tile_budget_default
    if vmem_limit_bytes is None:
        vmem_limit_bytes = vmem_limit_default

    # TODO(synk): verify with an xprof trace that this reshape (and the inverse
    # one below) is a bitcast, not an XLA relayout copy; if a copy appears, fuse
    # this LN into the producer or have the producer emit (B, C, H*W) directly.
    x3 = x_nchw.reshape(B, C, hw)
    params = jnp.stack([weight.astype(jnp.float32), bias.astype(jnp.float32)], axis=1)  # (C, 2)

    # --- VMEM footprint per (lane x batch-row): double-buffered in/out blocks
    # (with C padded to the sublane tile height of each dtype) plus ~2 live
    # full-block f32 temporaries inside the kernel. ---
    c_in = _sublane_pad(C, in_itemsize)
    c_out = _sublane_pad(C, out_itemsize)
    c_f32 = _sublane_pad(C, 4)
    bytes_per_lane_row = (2 * c_in * in_itemsize
                          + 2 * c_out * out_itemsize
                          + 2 * 4 * c_f32)

    # --- spatial (lane) tile ---
    if hw <= 128:
        thw = hw                                         # full-extent block is allowed
    else:
        lane_cap = max((vmem_tile_budget_bytes // bytes_per_lane_row) // 128 * 128, 128)
        thw = min(_round_up(hw, 128), lane_cap)
    n_hw = pl.cdiv(hw, thw)

    # --- batch tile: amortize the ~0.35us per-step overhead for small H*W by
    # packing multiple batch images into one block (targets ~2 MiB HBM/step). ---
    target_step_bytes = 2 * 1024 * 1024
    hbm_per_row_step = max(thw * C * (in_itemsize + out_itemsize), 1)
    tb = 1
    if n_hw == 1 and B > 1:
        tb_budget = max(int(vmem_tile_budget_bytes // max(thw * bytes_per_lane_row, 1)), 1)
        tb_target = max(-(-target_step_bytes // hbm_per_row_step), 1)
        tb = max(min(B, tb_budget, tb_target), 1)
    n_b = pl.cdiv(B, tb)

    # --- megacore: keep >=2 grid steps when possible so v7x's second
    # TensorCore gets work (harmless extra step on single-TC v5e/v6e). ---
    if n_b * n_hw == 1:
        if B >= 2:
            tb = pl.cdiv(B, 2)
            n_b = pl.cdiv(B, tb)
        elif thw >= 1024:
            thw = _round_up(pl.cdiv(hw, 2), 128)         # halves stay >= 512 lanes
            n_hw = pl.cdiv(hw, thw)

    grid = (n_b, n_hw)                                   # ragged tails handled by Pallas

    kernel = functools.partial(_layernorm2d_kernel, eps=eps)
    y3 = pl.pallas_call(
        kernel,
        out_shape=jax.ShapeDtypeStruct((B, C, hw), x_nchw.dtype),
        grid_spec=pltpu.PrefetchScalarGridSpec(
            num_scalar_prefetch=0,
            grid=grid,
            in_specs=[
                pl.BlockSpec((tb, C, thw), lambda i, j: (i, 0, j)),
                pl.BlockSpec((C, 2), lambda i, j: (0, 0)),
            ],
            out_specs=pl.BlockSpec((tb, C, thw), lambda i, j: (i, 0, j)),
        ),
        compiler_params=pltpu.CompilerParams(
            dimension_semantics=("parallel", "parallel"),
            vmem_limit_bytes=vmem_limit_bytes,
        ),
    )(x3, params)
    return y3.reshape(B, C, H, W)


def _reference(x_nchw, weight, bias, eps=1e-6):
    x = jnp.transpose(x_nchw, (0, 2, 3, 1)).astype(jnp.float32)
    mean = jnp.mean(x, axis=-1, keepdims=True)
    var = jnp.mean((x - mean) ** 2, axis=-1, keepdims=True)
    y = (x - mean) * jax.lax.rsqrt(var + eps) * weight.astype(jnp.float32) + bias.astype(jnp.float32)
    return jnp.transpose(y, (0, 3, 1, 2)).astype(x_nchw.dtype)


def _run_case(B, C, H, W, seed=0, dtype=jnp.float32, atol=1e-5, rtol=1e-5):
    key = jax.random.PRNGKey(seed)
    kx, kw, kb = jax.random.split(key, 3)
    x = jax.random.normal(kx, (B, C, H, W), dtype=jnp.float32).astype(dtype)
    # nn.LayerNorm init is weight=1, bias=0; perturb so the affine path is exercised.
    weight = jnp.ones((C,), jnp.float32) + 0.1 * jax.random.normal(kw, (C,), jnp.float32)
    bias = 0.1 * jax.random.normal(kb, (C,), jnp.float32)

    out = jax.block_until_ready(layernorm2d(x, weight, bias))
    ref = _reference(x, weight, bias)
    assert out.shape == (B, C, H, W)
    assert out.dtype == x.dtype
    ok = jnp.allclose(out.astype(jnp.float32), ref.astype(jnp.float32), atol=atol, rtol=rtol)
    assert ok, f"mismatch for {(B, C, H, W)} dtype={dtype}"


if __name__ == "__main__":
    # Small shape consistent with the module spec (batch=2, channels=4, 16x16).
    _run_case(2, 4, 16, 16, seed=0)
    # Ragged spatial extent (H*W not a multiple of 128) — exercises the cdiv tail.
    _run_case(2, 4, 17, 17, seed=1)
    # Larger channel count (ConvNeXt-T-like) with channels still on sublanes.
    _run_case(1, 96, 14, 14, seed=2)
    # Tiny spatial extent with batch blocking (TB > 1) and the megacore split.
    _run_case(4, 4, 8, 8, seed=3)
    # bf16 input/output: f32 statistics, cast only in the final store.
    _run_case(2, 4, 16, 16, seed=4, dtype=jnp.bfloat16, atol=2e-2, rtol=2e-2)
    print("KERNEL_OK")
</pallas_src>

<mosaic_0001>
module attributes {stable_mosaic.version = 11 : i64} {
  func.func @_layernorm2d_kernel(%arg0: i32, %arg1: i32, %arg2: memref<1x4x256xf32, #tpu.memory_space<vmem>>, %arg3: memref<4x2xf32, #tpu.memory_space<vmem>>, %arg4: memref<1x4x256xf32, #tpu.memory_space<vmem>>) attributes {dimension_semantics = [#tpu.dimension_semantics<parallel>, #tpu.dimension_semantics<parallel>], iteration_bounds = array<i64: 2, 1>, scalar_prefetch = 0 : i64, scratch_operands = 0 : i64, tpu.core_type = #tpu.core_type<tc>, window_params = [{transform_indices = @transform_0, window_bounds = array<i64: 1, 4, 256>}, {pipeline_mode = #tpu.pipeline_mode<synchronous>, transform_indices = @transform_1, window_bounds = array<i64: 4, 2>}, {transform_indices = @transform_2, window_bounds = array<i64: 1, 4, 256>}]} {
    %c0 = arith.constant 0 : index
    %c0_0 = arith.constant 0 : index
    %c0_1 = arith.constant 0 : index
    %0 = vector.load %arg2[%c0, %c0_0, %c0_1] : memref<1x4x256xf32, #tpu.memory_space<vmem>>, vector<1x4x256xf32>
    %cst = arith.constant dense<0.000000e+00> : vector<1x256xf32>
    %1 = vector.multi_reduction <add>, %0, %cst [1] : vector<1x4x256xf32> to vector<1x256xf32>
    %2 = vector.shape_cast %1 : vector<1x256xf32> to vector<1x1x256xf32>
    %cst_2 = arith.constant 4.000000e+00 : f32
    %3 = vector.broadcast %cst_2 : f32 to vector<1x1x256xf32>
    %4 = arith.divf %2, %3 : vector<1x1x256xf32>
    %5 = vector.broadcast %4 : vector<1x1x256xf32> to vector<1x4x256xf32>
    %6 = arith.subf %0, %5 : vector<1x4x256xf32>
    %7 = arith.mulf %6, %6 : vector<1x4x256xf32>
    %cst_3 = arith.constant dense<0.000000e+00> : vector<1x256xf32>
    %8 = vector.multi_reduction <add>, %7, %cst_3 [1] : vector<1x4x256xf32> to vector<1x256xf32>
    %9 = vector.shape_cast %8 : vector<1x256xf32> to vector<1x1x256xf32>
    %cst_4 = arith.constant 4.000000e+00 : f32
    %10 = vector.broadcast %cst_4 : f32 to vector<1x1x256xf32>
    %11 = arith.divf %9, %10 : vector<1x1x256xf32>
    %c0_5 = arith.constant 0 : index
    %c0_6 = arith.constant 0 : index
    %12 = vector.load %arg3[%c0_5, %c0_6] : memref<4x2xf32, #tpu.memory_space<vmem>>, vector<4x2xf32>
    %13 = vector.extract_strided_slice %12 {offsets = [0, 0], sizes = [4, 1], strides = [1, 1]} : vector<4x2xf32> to vector<4x1xf32>
    %14 = vector.extract_strided_slice %12 {offsets = [0, 1], sizes = [4, 1], strides = [1, 1]} : vector<4x2xf32> to vector<4x1xf32>
    %cst_7 = arith.constant 9.99999997E-7 : f32
    %15 = vector.broadcast %cst_7 : f32 to vector<1x1x256xf32>
    %16 = arith.addf %11, %15 : vector<1x1x256xf32>
    %17 = math.rsqrt %16 : vector<1x1x256xf32>
    %18 = vector.shape_cast %13 : vector<4x1xf32> to vector<1x4x1xf32>
    %19 = vector.broadcast %17 : vector<1x1x256xf32> to vector<1x4x256xf32>
    %20 = vector.broadcast %18 : vector<1x4x1xf32> to vector<1x4x256xf32>
    %21 = arith.mulf %19, %20 : vector<1x4x256xf32>
    %22 = arith.mulf %6, %21 : vector<1x4x256xf32>
    %23 = vector.shape_cast %14 : vector<4x1xf32> to vector<1x4x1xf32>
    %24 = vector.broadcast %23 : vector<1x4x1xf32> to vector<1x4x256xf32>
    %25 = arith.addf %22, %24 : vector<1x4x256xf32>
    %c0_8 = arith.constant 0 : index
    %c0_9 = arith.constant 0 : index
    %c0_10 = arith.constant 0 : index
    %26 = vector.load %arg4[%c0_8, %c0_9, %c0_10] : memref<1x4x256xf32, #tpu.memory_space<vmem>>, vector<1x4x256xf32>
    tpu.vector_store %arg4[%c0_8, %c0_9, %c0_10], %25 {strides = array<i32>} : memref<1x4x256xf32, #tpu.memory_space<vmem>>, vector<1x4x256xf32>,
    return
  }
  func.func @transform_0(%arg0: i32, %arg1: i32) -> (i32, i32, i32) {
    %c0_i32 = arith.constant 0 : i32
    %c0_i32_0 = arith.constant 0 : i32
    return %arg0, %c0_i32, %arg1 : i32, i32, i32
  }
  func.func @transform_1(%arg0: i32, %arg1: i32) -> (i32, i32) {
    %c0_i32 = arith.constant 0 : i32
    %c0_i32_0 = arith.constant 0 : i32
    %c0_i32_1 = arith.constant 0 : i32
    return %c0_i32, %c0_i32_0 : i32, i32
  }
  func.func @transform_2(%arg0: i32, %arg1: i32) -> (i32, i32, i32) {
    %c0_i32 = arith.constant 0 : i32
    %c0_i32_0 = arith.constant 0 : i32
    return %arg0, %c0_i32, %arg1 : i32, i32, i32
  }
}

</mosaic_0001>

<llo_original>
// kernel: tpu_custom_call.1
$region0: #{tpu_custom_call.1}
  #allocation0 [shape = 'u32[]', space=smem, size = 0x4, offset = 0x4, fixed_abs, tag = 'smem constant byte address 0x4 - core index']
  #allocation1 [shape = 'u32[144,128]{1,0:T(1,128)}', space=vmem, size = 0x12000, scoped, tag = 'internal scratch']
  %s0 = inlined_call_operand.hbm [shape: f32[2,4,256], index: 0, kind: input, shape index: {}]
  %s1 = inlined_call_operand.vmem [shape: f32[4,2], index: 1, kind: input, shape index: {}]
  %s2 = inlined_call_operand.hbm [shape: f32[2,4,256], index: 2, kind: output, shape index: {}]
  %s3 = sld [smem:[#allocation0]]
  $region45: #{tpu_custom_call.1} parent=0
    _
  %s5 = ssub.s32 1, %s3
  %s6 = scalar_select 0, %s5, %s3
  $region1: #{tpu_custom_call.1} parent=0
    #allocation2 [shape = 'u8[8192]{0}', space=vmem, size = 0x2000, scoped, tag = 'input window, operand 0']
    #allocation3 [shape = 's32[2]{0}', space=sflag, size = 0x8, scoped, tag = 'scoped memory for tpu_custom_call.1']
    #allocation4 [shape = 's32[2]{0}', space=sflag, size = 0x8, scoped, tag = 'scoped memory for tpu_custom_call.1']
    #allocation5 [shape = 'u8[8192]{0}', space=vmem, size = 0x2000, scoped, tag = 'output window, operand 0']
    %7 = vsyncpa [#allocation3], 0
    %s8 = scalar_lea.sflag [#allocation3], 1
    %9 = vsyncpa %s8, 0
    %10 = vsyncpa [#allocation4], 0
    %s11 = scalar_lea.sflag [#allocation4], 1
    %12 = vsyncpa %s11, 0
    loop: start=0, step=1, limit=4
    $region2: #{tpu_custom_call.1} parent=1 // loop_pre_header
      _
    $region3: #{tpu_custom_call.1} parent=1 // loop_header
      %s14 = sphi 0, %s18
      %p15 = scmp.ge.s32.totalorder %s14, 4
      %s21 = sphi 0, %s33
      %s22 = sphi 0, %s29
      %s23 = sphi 0, %s21
      %s24 = sphi 0, %s22
      %s25 = sphi 0, %s23
      %s26 = sphi 0, %s24
      %s38 = sphi 0, %s40
      %s41 = sphi 0, %s38
      %s42 = sphi 0, %s41
      %s58 = sphi 0, %s42
      %s62 = sphi 0, %s62
      %s64 = sphi 0, %s62
      %s65 = sphi 0, %s64
      %s79 = sphi 0, %s65
      %s87 = sphi 0, %s89
      %s90 = sphi 0, %s87
      %s91 = sphi 0, %s90
      %s107 = sphi 0, %s91
    $region4: #{tpu_custom_call.1} parent=1 // loop_header_branch
      %17 = sbr.rel (%p15) target = $region8
    $region5: #{tpu_custom_call.1} parent=1 // loop_body
      %s19 = ssub.s32 %s14, 1
      %s20 = ssub.s32 %s14, 2
      %s27 = sadd.s32 1, %s22
      %p28 = scmp.ge.s32.totalorder %s27, 1
      %s29 = scalar_select %p28, 0, %s27
      %s30 = sadd.s32 1, %s21
      %s31 = scalar_select %p28, %s30, %s21
      %p32 = scmp.ge.s32.totalorder %s31, 2
      %s33 = scalar_select %p32, 0, %s31
      %s34 = ssub.s32 %s21, %s33
      %s35 = ssub.s32 %s22, %s29
      %s36 = sor.u32 %s34, %s35
      %p37 = scmp.eq.s32.totalorder %s36, 0
      %s39 = sadd.s32 %s38, 1
      %s40 = scalar_select %p37, %s38, %s39
      %p43 = pneg %p37
      %p44 = scmp.eq.s32.totalorder %s14, 1
      %p45 = por %p43, %p44
      %p46 = scmp.ne.s32.totalorder %s38, %s41
      %p47 = scmp.eq.s32.totalorder %s14, 0
      %p48 = por %p46, %p47
      %p49 = scmp.ne.s32.totalorder %s38, %s41
      %p50 = scmp.eq.s32.totalorder %s19, 1
      %p51 = por %p49, %p50
      %p52 = scmp.ne.s32.totalorder %s41, %s42
      %p53 = scmp.eq.s32.totalorder %s19, 0
      %p54 = por %p52, %p53
      %p55 = scmp.ne.s32.totalorder %s41, %s42
      %p56 = scmp.eq.s32.totalorder %s20, 1
      %p57 = por %p55, %p56
      %p59 = scmp.ne.s32.totalorder %s42, %s58
      %p60 = scmp.eq.s32.totalorder %s20, 0
      %p61 = por %p59, %p60
      %s63 = sadd.s32 %s62, 1
      %p66 = scmp.eq.s32.totalorder %s14, 1
      %p67 = scmp.ne.s32.totalorder %s62, %s64
      %p68 = scmp.eq.s32.totalorder %s14, 0
      %p69 = por %p67, %p68
      %p70 = scmp.ne.s32.totalorder %s62, %s64
      %p71 = scmp.eq.s32.totalorder %s19, 1
      %p72 = por %p70, %p71
      %p73 = scmp.ne.s32.totalorder %s64, %s65
      %p74 = scmp.eq.s32.totalorder %s19, 0
      %p75 = por %p73, %p74
      %p76 = scmp.ne.s32.totalorder %s64, %s65
      %p77 = scmp.eq.s32.totalorder %s20, 1
      %p78 = por %p76, %p77
      %p80 = scmp.ne.s32.totalorder %s65, %s79
      %p81 = scmp.eq.s32.totalorder %s20, 0
      %p82 = por %p80, %p81
      %s83 = ssub.s32 %s21, %s33
      %s84 = ssub.s32 %s22, %s29
      %s85 = sor.u32 %s83, %s84
      %p86 = scmp.eq.s32.totalorder %s85, 0
      %s88 = sadd.s32 %s87, 1
      %s89 = scalar_select %p86, %s87, %s88
      %p92 = pneg %p86
      %p93 = scmp.eq.s32.totalorder %s14, 1
      %p94 = por %p92, %p93
      %p95 = scmp.ne.s32.totalorder %s87, %s90
      %p96 = scmp.eq.s32.totalorder %s14, 0
      %p97 = por %p95, %p96
      %p98 = scmp.ne.s32.totalorder %s87, %s90
      %p99 = scmp.eq.s32.totalorder %s19, 1
      %p100 = por %p98, %p99
      %p101 = scmp.ne.s32.totalorder %s90, %s91
      %p102 = scmp.eq.s32.totalorder %s19, 0
      %p103 = por %p101, %p102
      %p104 = scmp.ne.s32.totalorder %s90, %s91
      %p105 = scmp.eq.s32.totalorder %s20, 1
      %p106 = por %p104, %p105
      %p108 = scmp.ne.s32.totalorder %s91, %s107
      %p109 = scmp.eq.s32.totalorder %s20, 0
      %p110 = por %p108, %p109
      %p111 = scmp.le.s32.totalorder 1, %s14
      %p112 = scmp.lt.s32.totalorder %s14, 3
      %p113 = pnand %p111, %p112
      %p114 = pneg %p113
      // Predicated region
      $region9: #{tpu_custom_call.1} parent=5 // pred_check
        _
      $region10: #{tpu_custom_call.1} parent=5 // pred_check_branch
        %116 = sbr.rel (%p113) target = $region12
      $region11: #{tpu_custom_call.1} parent=5 // pred_region
        %s117 = ssub.s32 %s14, 1
        // Predicated region
        $region13: #{tpu_custom_call.1} parent=11 // pred_check
          %p118 = pneg %p75
        $region14: #{tpu_custom_call.1} parent=11 // pred_check_branch
          %120 = sbr.rel (%p118) target = $region16
        $region15: #{tpu_custom_call.1} parent=11 // pred_region
          _
        $region16: #{tpu_custom_call.1} parent=11 // pred_fallthru
          _
      $region12: #{tpu_custom_call.1} parent=5 // pred_fallthru
        _
      %p121 = scmp.lt.s32.totalorder %s14, 2
      // Predicated region
      $region17: #{tpu_custom_call.1} parent=5 // pred_check
        %p122 = pneg %p121
      $region18: #{tpu_custom_call.1} parent=5 // pred_check_branch
        %124 = sbr.rel (%p122) target = $region20
      $region19: #{tpu_custom_call.1} parent=5 // pred_region
        // Predicated region
        $region21: #{tpu_custom_call.1} parent=19 // pred_check
          %p125 = pneg %p48
        $region22: #{tpu_custom_call.1} parent=19 // pred_check_branch
          %127 = sbr.rel (%p125) target = $region24
        $region23: #{tpu_custom_call.1} parent=19 // pred_region
          %s128 = sand.u32 %s38, 1
          %s129 = scalar_lea.sflag [#allocation3], %s128
          %s130 = sand.u32 %s38, 1
          %s131 = smul.addr %s130, 8
          %s132 = scalar_lea.vmem [#allocation2], %s131
          %s133 = smul.u32 2, %s22
          %s135 = ssub.s32 128, 128
          %136 = vsyncadd %s129, %s135
          %s137 = smul.addr %s21, 2
          %s138 = sadd.s32 %s133, %s137
          %s139 = smul.addr %s138, 64
          %s140 = scalar_lea.hbm %s0, %s139
          %s142 = sshll.u32 %s132, 4
          %s143 = int_to_ptr.vmem [resolvable:$true] %s142
          %145 = dma.hbm_to_vmem [thread:$0]  %s140, 128, %s143, %s129
        $region24: #{tpu_custom_call.1} parent=19 // pred_fallthru
          _
      $region20: #{tpu_custom_call.1} parent=5 // pred_fallthru
        _
      %p146 = scmp.le.s32.totalorder 1, %s14
      %p147 = scmp.lt.s32.totalorder %s14, 3
      %p148 = pnand %p146, %p147
      %p149 = pneg %p148
      // Predicated region
      $region25: #{tpu_custom_call.1} parent=5 // pred_check
        _
      $region26: #{tpu_custom_call.1} parent=5 // pred_check_branch
        %151 = sbr.rel (%p148) target = $region28
      $region27: #{tpu_custom_call.1} parent=5 // pred_region
        %s152 = ssub.s32 %s14, 1
        %s153 = sand.u32 %s41, 1
        %s154 = scalar_lea.sflag [#allocation3], %s153
        %s155 = sand.u32 %s41, 1
        %s156 = smul.addr %s155, 8
        %s157 = scalar_lea.vmem [#allocation2], %s156
        // Predicated region
        $region29: #{tpu_custom_call.1} parent=27 // pred_check
          %p158 = pneg %p54
        $region30: #{tpu_custom_call.1} parent=27 // pred_check_branch
          %160 = sbr.rel (%p158) target = $region32
        $region31: #{tpu_custom_call.1} parent=27 // pred_region
          %161 = dma.done %s154, 128
        $region32: #{tpu_custom_call.1} parent=27 // pred_fallthru
          _
        %s162 = sand.u32 %s41, 1
        %s163 = scalar_lea.sflag [#allocation3], %s162
        %s164 = sand.u32 %s41, 1
        %s165 = smul.addr %s164, 8
        %s166 = scalar_lea.vmem [#allocation2], %s165
        %p167 = pneg %p54
        %p168 = pneg %p51
        %p169 = pneg %p75
        %p170 = pneg %p72
        %p171 = pneg %p103
        %p172 = pneg %p100
        %s173 = sand.u32 %s90, 1
        %s174 = scalar_lea.sflag [#allocation4], %s173
        %s175 = sand.u32 %s90, 1
        %s176 = smul.addr %s175, 8
        %s177 = scalar_lea.vmem [#allocation5], %s176
        %s178 = smul.u32 2, %s24
        %s179 = smul.u32 2, %s24
        %v180 = vld [vmem:[%s157] sm:$0xff]
        %v182 = vcombine.high %v180, %v180
        %vm184 = vcmask 1043456
        %v185 = vsel %vm184, %v180, 0.0
        %v186 = vrot.slane %v185, 4
        %v187 = vadd.f32 %v185, %v186
        %v188 = vrot.slane %v187, 2
        %v189 = vadd.f32 %v187, %v188
        %v190 = vrot.slane %v189, 1
        %v191 = vadd.f32 %v189, %v190
        %v192 = vsel %vm184, %v182, 0.0
        %v193 = vrot.slane %v192, 4
        %v194 = vadd.f32 %v192, %v193
        %v195 = vrot.slane %v194, 2
        %v196 = vadd.f32 %v194, %v195
        %v197 = vrot.slane %v196, 1
        %v198 = vadd.f32 %v196, %v197
        %v199 = vrcp.pop 4.0
        %v200 = vmul.f32 %v191, %v199
        %v201 = vmul.f32 %v198, %v199
        %v204 = vcombine.low %v200, %v201
        %v206 = vsub.f32 %v180, %v204
        %v207 = vmul.f32 %v206, %v206
        %v209 = vcombine.high %v207, %v207
        %v211 = vsel %vm184, %v207, 0.0
        %v212 = vrot.slane %v211, 4
        %v213 = vadd.f32 %v211, %v212
        %v214 = vrot.slane %v213, 2
        %v215 = vadd.f32 %v213, %v214
        %v216 = vrot.slane %v215, 1
        %v217 = vadd.f32 %v215, %v216
        %v218 = vsel %vm184, %v209, 0.0
        %v219 = vrot.slane %v218, 4
        %v220 = vadd.f32 %v218, %v219
        %v221 = vrot.slane %v220, 2
        %v222 = vadd.f32 %v220, %v221
        %v223 = vrot.slane %v222, 1
        %v224 = vadd.f32 %v222, %v223
        %v225 = vmul.f32 %v217, %v199
        %v226 = vmul.f32 %v224, %v199
        %v227 = vld [vmem:[%s1] sm:$0xf]
        %v228 = vadd.f32 %v225, 1e-06
        %v229 = vadd.f32 %v226, 1e-06
        %v230 = vrsqrt.pop %v228
        %v231 = vrsqrt.pop %v229
        %233 = vset.pattern.permute.xlu0 0
        %234 = vperm.xlu0 %233, %v227
        %v235 = vpop.permute.xlu0 %234
        %v237 = vmul.f32 %v230, %v235
        %v238 = vmul.f32 %v231, %v235
        %v241 = vcombine.low %v237, %v238
        %v243 = vmul.f32 %v206, %v241
        %244 = vset.pattern.permute.xlu0 1
        %245 = vperm.xlu0 %244, %v227
        %v246 = vpop.permute.xlu0 %245
        %v248 = vunpack.c.l.s4 839922192
        %v249 = vunpack.c.0.s8 %v248
        %v250 = vlaneseq
        %v251 = vshrl.u32 %v250, 7
        %v252 = vsub.s32 %v249, %v251
        %v253 = vrot.slane %v246, %v252
        %v255 = vadd.f32 %v243, %v253
        %256 = vst [vmem:[%s177] sm:$0xff] %v255
        %s257 = sand.u32 %s90, 1
        %s258 = scalar_lea.sflag [#allocation4], %s257
        %s259 = sand.u32 %s90, 1
        %s260 = smul.addr %s259, 8
        %s261 = scalar_lea.vmem [#allocation5], %s260
        // Predicated region
        $region33: #{tpu_custom_call.1} parent=27 // pred_check
          %p262 = pneg %p100
        $region34: #{tpu_custom_call.1} parent=27 // pred_check_branch
          %264 = sbr.rel (%p262) target = $region36
        $region35: #{tpu_custom_call.1} parent=27 // pred_region
          %s265 = smul.u32 2, %s24
          %s267 = ssub.s32 128, 128
          %268 = vsyncadd %s258, %s267
          %s269 = smul.addr %s23, 2
          %s270 = sadd.s32 %s265, %s269
          %s271 = smul.addr %s270, 64
          %s272 = scalar_lea.hbm %s2, %s271
          %s274 = sshll.u32 %s261, 4
          %s275 = int_to_ptr.vmem [resolvable:$true] %s274
          %277 = dma.vmem_to_hbm [thread:$0]  %s275, 128, %s272, %s258
        $region36: #{tpu_custom_call.1} parent=27 // pred_fallthru
          _
      $region28: #{tpu_custom_call.1} parent=5 // pred_fallthru
        _
      %p278 = scmp.le.s32.totalorder 2, %s14
      // Predicated region
      $region37: #{tpu_custom_call.1} parent=5 // pred_check
        %p279 = pneg %p278
      $region38: #{tpu_custom_call.1} parent=5 // pred_check_branch
        %281 = sbr.rel (%p279) target = $region40
      $region39: #{tpu_custom_call.1} parent=5 // pred_region
        %s282 = ssub.s32 %s14, 2
        // Predicated region
        $region41: #{tpu_custom_call.1} parent=39 // pred_check
          %p283 = pneg %p106
        $region42: #{tpu_custom_call.1} parent=39 // pred_check_branch
          %285 = sbr.rel (%p283) target = $region44
        $region43: #{tpu_custom_call.1} parent=39 // pred_region
          %s286 = sand.u32 %s91, 1
          %s287 = scalar_lea.sflag [#allocation4], %s286
          %s288 = sand.u32 %s91, 1
          %s289 = smul.addr %s288, 8
          %s290 = scalar_lea.vmem [#allocation5], %s289
          %291 = dma.done %s287, 128
        $region44: #{tpu_custom_call.1} parent=39 // pred_fallthru
          _
      $region40: #{tpu_custom_call.1} parent=5 // pred_fallthru
        _
    $region6: #{tpu_custom_call.1} parent=1 // loop_footer
      %s18 = sadd.s32 1, %s14
    $region7: #{tpu_custom_call.1} parent=1 // loop_footer_branch
      %13 = sbr.rel target = $region3
    $region8: #{tpu_custom_call.1} parent=1 // loop_exit
      _
    %292 = vsyncpa [#allocation3], 1
    %s293 = scalar_lea.sflag [#allocation3], 1
    %294 = vsyncpa %s293, 1
    %295 = vsyncpa [#allocation4], 1
    %s296 = scalar_lea.sflag [#allocation4], 1
    %297 = vsyncpa %s296, 1

</llo_original>
